<compile_context>
chip_gen: v7x
topology: tpu7x:2x2x1
jax: 0.10.0
libtpu: 0.0.40
codegen_flags: <defaults>
</compile_context>

<pallas_src>
import functools

import jax
import jax.numpy as jnp
from jax import lax
from jax.experimental import pallas as pl
from jax.experimental.pallas import tpu as pltpu


def _round_up(x, m):
    return (x + m - 1) // m * m


def _ceil_div(a, b):
    return -(-a // b)


def _vmem_config():
    """(vmem_limit_bytes, tiling_budget_bytes), sized per TPU generation."""
    cap = None
    try:
        cap = getattr(pltpu.get_tpu_info(), "vmem_capacity_bytes", None)
    except Exception:
        cap = None
    if cap is None:
        cap = 64 * 1024 * 1024                      # assume a 64 MiB (v7x-like) part
    if cap >= 96 * 1024 * 1024:                     # v5e / v6e: 128 MiB VMEM
        return 100 * 1024 * 1024, 56 * 1024 * 1024
    return 32 * 1024 * 1024, 16 * 1024 * 1024       # conservative v7x-safe numbers


def _choose_tb(b, s_len, k_eff, h_conv, h_pool, ng, f_pad,
               in_itemsize, out_itemsize, budget, weight_bufs):
    """Batch-tile size (multiple of the input sublane pack).

    Largest TB such that double-buffered in/out blocks + resident weights/params
    + the f32 conv accumulator fit `budget`, then capped so the grid has >= ~4
    steps when the batch allows, while keeping TB*h_conv (MXU M-dim) >= ~1024.
    """
    gran = 16 if in_itemsize == 2 else 8            # packed-sublane granularity
    sub_out = 16 if out_itemsize == 2 else 8
    k_lanes = _round_up(k_eff, 128)

    fixed = (weight_bufs * ng * _round_up(k_eff, gran) * f_pad * in_itemsize   # weights
             + 2 * 8 * f_pad * 4)                                              # params
    avail = max(budget - fixed, 1 << 20)

    def vmem_cost(tb):
        in_blk = s_len * tb * k_lanes * in_itemsize
        out_blk = h_pool * _round_up(tb, sub_out) * f_pad * out_itemsize
        acc = h_conv * tb * f_pad * 4
        # 2x in/out (double-buffered) + f32 accumulator + one in-block of margin
        # for the per-tap lhs operands feeding the MXU.
        return 2 * in_blk + 2 * out_blk + acc + in_blk

    b_g = _round_up(max(b, 1), gran)
    tb = gran
    while tb < b_g and vmem_cost(tb + gran) <= avail:
        tb += gran

    min_rows_tb = _round_up(_ceil_div(1024, max(h_conv, 1)), gran)
    steps_tb = _round_up(_ceil_div(b_g, 4), gran)
    tb = min(tb, max(steps_tb, min_rows_tb, gran))
    return min(tb, b_g)


def _conv_block_kernel(x_ref, w_ref, p_ref, o_ref, *, ng, q_grp, h_conv, h_pool, tb):
    """ConvBlock forward for one batch tile.

    x_ref : (S, TB, K_eff)       tap/stride-folded channels-last input.  Tap group g
                                 reads leading-dim window [g*q_grp, g*q_grp + h_conv)
                                 — a pure address offset, no sublane relayout.
    w_ref : (ng, K_eff, F_pad)   grouped conv weights (lane axis = q_grp*sh*Cin).
    p_ref : (8, F_pad) f32       row0 conv bias, row1 BN scale, row2 BN shift.
    o_ref : (h_pool, TB, F_pad)  pooled output tile (lane-dense: F_pad % 128 == 0).
    """
    k_eff = w_ref.shape[1]
    f_pad = w_ref.shape[2]
    m = h_conv * tb

    def tap(g, acc):
        # Leading-dim slice (address offset only); TB % sublane-pack == 0 makes the
        # (h_conv, TB) -> M merge layout-preserving.
        xg = x_ref[pl.ds(g * q_grp, h_conv)].reshape(m, k_eff)
        return acc + jnp.dot(xg, w_ref[g], preferred_element_type=jnp.float32)

    acc = jnp.zeros((m, f_pad), jnp.float32)
    if ng <= 4:                                     # few tap groups: fully static
        for g in range(ng):
            acc = tap(g, acc)
    else:                                           # many taps: bounded unroll
        acc = lax.fori_loop(0, ng, tap, acc, unroll=4)

    # Epilogue (f32): conv bias, ReLU, folded eval-mode BatchNorm affine.
    y = jnp.maximum(acc + p_ref[0:1, :], 0.0)
    y = y * p_ref[1:2, :] + p_ref[2:3, :]

    # MaxPool2d((2,1)), floor mode: pooling partners are adjacent leading-dim rows
    # -> vreg select + elementwise max (no cross-sublane reduce).
    y = y.reshape(h_conv, tb, f_pad)[: 2 * h_pool].reshape(h_pool, 2, tb, f_pad)
    o_ref[...] = jnp.maximum(y[:, 0], y[:, 1]).astype(o_ref.dtype)
    # Dropout(0.25) is identity in eval mode.
    # TODO(synk): training-mode dropout / batch-statistics BN are not implemented.


def conv_block_forward(x_nchw, weight, bias, bn_gamma, bn_beta, bn_mean, bn_var,
                       *, f, w, s, eps=1e-5, compute_dtype=jnp.bfloat16,
                       out_dtype=jnp.float32, out_layout="nchw"):
    """Pallas ConvBlock forward (eval mode).

    x_nchw (N, Cin, H, W) -> NCHW (N, F, H_pool, W) by default, or the channels-last
    slab (H_pool, N*W, F) with out_layout="hbf" for chaining ConvBlocks.
    Inputs/weights are cast to `compute_dtype` (bf16 default) with f32 MXU
    accumulation and an f32 epilogue — a deliberate inference-numerics choice.
    """
    sh, sw = (s, s) if isinstance(s, int) else tuple(s)
    assert sw == 1, "kernel width is 1; stride along W must be 1 (as in CREPE)"

    n, cin, h, wd = x_nchw.shape
    assert weight.shape == (f, cin, w, 1)
    p1 = (w - 1) // 2
    p2 = w - 1 - p1
    h_pad = h + p1 + p2
    h_conv = (h_pad - w) // sh + 1
    h_pool = h_conv // 2
    assert h_conv >= 1 and h_pool >= 1, "input too small for this ConvBlock config"
    b = n * wd

    k = sh * cin                                    # stride residue folded into lanes
    nq = (w - 1) // sh + 1                          # taps after the residue fold
    # Tap-group fold: when K < 128 lanes, contract q_grp adjacent taps per matmul so
    # the MXU sees a 128+-deep contraction (and ~q_grp x fewer matmuls).
    q_grp = 1 if k >= 128 else min(nq, _ceil_div(128, k))
    ng = _ceil_div(nq, q_grp)
    k_eff = q_grp * k
    s_len = h_conv + (ng - 1) * q_grp               # leading length seen by the kernel
    h_x_m = s_len + q_grp - 1                       # folded rows needed before grouping
    f_pad = _round_up(f, 128)                       # lane-dense output & weights

    # ---- layout glue (wrapper-side plumbing only) -----------------------------
    # Zero-pad/crop H to exactly h_x_m*sh rows (top pad p1, bottom as needed; rows
    # past h_pad only ever meet zero weight taps), put H leading, merge (N, W) -> B,
    # fold the stride residue into the lane axis:
    #   x_m[t, b, r*Cin + c] == x_padded[b, t*sh + r, c]
    h_need = h_x_m * sh
    bottom = max(0, h_need - (h + p1))
    xp = jnp.pad(x_nchw, ((0, 0), (0, 0), (p1, bottom), (0, 0)))[:, :, :h_need, :]
    xt = jnp.transpose(xp, (2, 0, 3, 1)).reshape(h_x_m, sh, b, cin)
    x_m = jnp.transpose(xt, (0, 2, 1, 3)).reshape(h_x_m, b, k).astype(compute_dtype)
    # Tap-group fold (wrapper-side im2col over q_grp adjacent taps):
    #   xg[t, b, j*K + kk] == x_m[t + j, b, kk]
    if q_grp > 1:
        xg = jnp.concatenate([x_m[j:j + s_len] for j in range(q_grp)], axis=-1)
    else:
        xg = x_m

    # torch conv weight (F, Cin, w, 1) -> residue- and group-folded (ng, K_eff, F_pad):
    #   w_packed[g, j*K + r*Cin + c, fo] = weight[fo, c, (g*q_grp + j)*sh + r, 0]
    w_taps = jnp.transpose(weight[..., 0], (2, 1, 0)).astype(jnp.float32)   # (w, Cin, F)
    w_taps = jnp.pad(w_taps, ((0, ng * q_grp * sh - w), (0, 0), (0, f_pad - f)))
    w_packed = w_taps.reshape(ng, k_eff, f_pad).astype(compute_dtype)

    # Fold eval-mode BatchNorm into a per-channel affine; pack bias/scale/shift into
    # one (8, F_pad) f32 tile.
    scale = (bn_gamma / jnp.sqrt(bn_var + eps)).astype(jnp.float32)
    shift = bn_beta.astype(jnp.float32) - bn_mean.astype(jnp.float32) * scale
    params = jnp.zeros((8, f_pad), jnp.float32)
    params = params.at[0, :f].set(bias.astype(jnp.float32))
    params = params.at[1, :f].set(scale)
    params = params.at[2, :f].set(shift)

    # ---- batch tiling (generation-aware VMEM budget) --------------------------
    vmem_limit, budget = _vmem_config()
    buffered_cls = getattr(pl, "Buffered", None)
    weight_bufs = 1 if buffered_cls is not None else 2
    in_itemsize = jnp.dtype(compute_dtype).itemsize
    out_itemsize = jnp.dtype(out_dtype).itemsize
    tb = _choose_tb(b, s_len, k_eff, h_conv, h_pool, ng, f_pad,
                    in_itemsize, out_itemsize, budget, weight_bufs)
    b_pad = _round_up(b, tb)
    if b_pad != b:
        xg = jnp.pad(xg, ((0, 0), (0, b_pad - b), (0, 0)))
    grid = b_pad // tb

    kernel = functools.partial(_conv_block_kernel, ng=ng, q_grp=q_grp,
                               h_conv=h_conv, h_pool=h_pool, tb=tb)

    def run(resident_mode):
        extra = {} if resident_mode is None else {"pipeline_mode": resident_mode}
        call = pl.pallas_call(
            kernel,
            out_shape=jax.ShapeDtypeStruct((h_pool, b_pad, f_pad), out_dtype),
            grid_spec=pltpu.PrefetchScalarGridSpec(
                num_scalar_prefetch=0,
                grid=(grid,),
                in_specs=[
                    pl.BlockSpec((s_len, tb, k_eff), lambda i: (0, i, 0)),
                    # weights / params never change across the grid: single-buffer.
                    pl.BlockSpec((ng, k_eff, f_pad), lambda i: (0, 0, 0), **extra),
                    pl.BlockSpec((8, f_pad), lambda i: (0, 0), **extra),
                ],
                out_specs=pl.BlockSpec((h_pool, tb, f_pad), lambda i: (0, i, 0)),
            ),
            compiler_params=pltpu.CompilerParams(
                dimension_semantics=("parallel",),
                vmem_limit_bytes=vmem_limit,
            ),
        )
        return call(xg, w_packed, params)

    if buffered_cls is not None:
        try:
            out = run(buffered_cls(1))
        except Exception:                # older jax without single-buffer pipeline_mode
            out = run(None)
    else:
        out = run(None)

    out = out[:, :b, :f]                            # (H_pool, B, F) slab
    if out_layout == "hbf":
        return out                                  # channels-last slab for chaining
    # TODO(synk): accepting the (H, B, Cin) slab as input (chained ConvBlocks) would
    # remove the NCHW <-> channels-last transposes entirely.
    return jnp.transpose(out.reshape(h_pool, n, wd, f), (1, 3, 0, 2))


def conv_block_reference(x, weight, bias, gamma, beta, mean, var, *, f, w, s, eps=1e-5):
    """Pure-JAX f32 reference matching the PyTorch forward (eval mode)."""
    sh, sw = (s, s) if isinstance(s, int) else tuple(s)
    p1 = (w - 1) // 2
    p2 = w - 1 - p1
    xp = jnp.pad(x, ((0, 0), (0, 0), (p1, p2), (0, 0)))
    y = jax.lax.conv_general_dilated(
        xp, weight, window_strides=(sh, sw), padding="VALID",
        dimension_numbers=("NCHW", "OIHW", "NCHW"))
    y = y + bias[None, :, None, None]
    y = jnp.maximum(y, 0.0)
    scale = gamma / jnp.sqrt(var + eps)
    shift = beta - mean * scale
    y = y * scale[None, :, None, None] + shift[None, :, None, None]
    hp = y.shape[2] // 2
    y = y[:, :, : 2 * hp, :]
    return y.reshape(y.shape[0], y.shape[1], hp, 2, y.shape[3]).max(axis=3)


if __name__ == "__main__":
    configs = [
        dict(n=2, cin=4, h=16, wd=2, f=8, w=5, s=(1, 1)),    # stride-1, single tap group
        dict(n=2, cin=4, h=16, wd=2, f=8, w=5, s=(2, 1)),    # strided (residue fold)
        dict(n=2, cin=1, h=32, wd=1, f=8, w=4, s=(4, 1)),    # CREPE-layer-1-like stride
        dict(n=2, cin=16, h=64, wd=1, f=8, w=33, s=(1, 1)),  # many taps: grouped + fori path
    ]
    key = jax.random.PRNGKey(0)
    for cfg in configs:
        key, *ks = jax.random.split(key, 8)
        x = jax.random.normal(ks[0], (cfg["n"], cfg["cin"], cfg["h"], cfg["wd"]), jnp.float32)
        weight = 0.1 * jax.random.normal(ks[1], (cfg["f"], cfg["cin"], cfg["w"], 1), jnp.float32)
        bias = 0.1 * jax.random.normal(ks[2], (cfg["f"],), jnp.float32)
        gamma = 1.0 + 0.1 * jax.random.normal(ks[3], (cfg["f"],), jnp.float32)
        beta = 0.1 * jax.random.normal(ks[4], (cfg["f"],), jnp.float32)
        mean = 0.05 * jax.random.normal(ks[5], (cfg["f"],), jnp.float32)
        var = jnp.abs(1.0 + 0.1 * jax.random.normal(ks[6], (cfg["f"],), jnp.float32))

        out = conv_block_forward(x, weight, bias, gamma, beta, mean, var,
                                 f=cfg["f"], w=cfg["w"], s=cfg["s"])
        out = jax.block_until_ready(out)
        ref = conv_block_reference(x, weight, bias, gamma, beta, mean, var,
                                   f=cfg["f"], w=cfg["w"], s=cfg["s"])
        assert out.shape == ref.shape, (cfg, out.shape, ref.shape)
        max_err = float(jnp.max(jnp.abs(out - ref)))
        assert jnp.allclose(out, ref, atol=3e-2, rtol=3e-2), (cfg, max_err)

    # bf16 / channels-last output path (for chaining ConvBlocks without the NCHW
    # round trip), checked against the same reference with a looser tolerance.
    out_hbf = conv_block_forward(x, weight, bias, gamma, beta, mean, var,
                                 f=cfg["f"], w=cfg["w"], s=cfg["s"],
                                 out_dtype=jnp.bfloat16, out_layout="hbf")
    out_hbf = jax.block_until_ready(out_hbf).astype(jnp.float32)
    n, _, hp, wd = ref.shape
    ref_hbf = jnp.transpose(ref, (2, 0, 3, 1)).reshape(hp, n * wd, cfg["f"])
    assert out_hbf.shape == ref_hbf.shape, (out_hbf.shape, ref_hbf.shape)
    assert jnp.allclose(out_hbf, ref_hbf, atol=6e-2, rtol=6e-2), float(
        jnp.max(jnp.abs(out_hbf - ref_hbf)))

    print("KERNEL_OK")
</pallas_src>

<mosaic_0001>
module attributes {stable_mosaic.version = 11 : i64} {
  func.func @_conv_block_kernel(%arg0: i32, %arg1: memref<16x16x20xbf16, #tpu.memory_space<vmem>>, %arg2: memref<1x20x128xbf16, #tpu.memory_space<vmem>>, %arg3: memref<8x128xf32, #tpu.memory_space<vmem>>, %arg4: memref<8x16x128xf32, #tpu.memory_space<vmem>>) attributes {dimension_semantics = [#tpu.dimension_semantics<parallel>], iteration_bounds = array<i64: 1>, scalar_prefetch = 0 : i64, scratch_operands = 0 : i64, tpu.core_type = #tpu.core_type<tc>, window_params = [{transform_indices = @transform_0, window_bounds = array<i64: 16, 16, 20>}, {pipeline_mode = #tpu.pipeline_mode<synchronous>, transform_indices = @transform_1, window_bounds = array<i64: 1, 20, 128>}, {pipeline_mode = #tpu.pipeline_mode<synchronous>, transform_indices = @transform_2, window_bounds = array<i64: 8, 128>}, {transform_indices = @transform_3, window_bounds = array<i64: 8, 16, 128>}]} {
    %cst = arith.constant 0.000000e+00 : f32
    %0 = vector.broadcast %cst : f32 to vector<256x128xf32>
    %c0 = arith.constant 0 : index
    %c0_0 = arith.constant 0 : index
    %c0_1 = arith.constant 0 : index
    %1 = vector.load %arg1[%c0, %c0_0, %c0_1] : memref<16x16x20xbf16, #tpu.memory_space<vmem>>, vector<16x16x20xbf16>
    %2 = vector.shape_cast %1 : vector<16x16x20xbf16> to vector<256x20xbf16>
    %c0_2 = arith.constant 0 : index
    %c0_3 = arith.constant 0 : index
    %c0_4 = arith.constant 0 : index
    %3 = vector.load %arg2[%c0_2, %c0_3, %c0_4] : memref<1x20x128xbf16, #tpu.memory_space<vmem>>, vector<1x20x128xbf16>
    %4 = vector.shape_cast %3 : vector<1x20x128xbf16> to vector<20x128xbf16>
    %cst_5 = arith.constant dense<0.000000e+00> : vector<256x128xf32>
    %5 = tpu.matmul %2, %4, %cst_5 {dimension_numbers = #tpu.dot_dimension_numbers<[1], [0], [0], [1], [0, 0, 1, 1], [], []>} : vector<256x20xbf16>, vector<20x128xbf16>, vector<256x128xf32> -> vector<256x128xf32>
    %6 = arith.addf %0, %5 : vector<256x128xf32>
    %c0_6 = arith.constant 0 : index
    %c0_7 = arith.constant 0 : index
    %7 = vector.load %arg3[%c0_6, %c0_7] : memref<8x128xf32, #tpu.memory_space<vmem>>, vector<1x128xf32>
    %8 = vector.broadcast %7 : vector<1x128xf32> to vector<256x128xf32>
    %9 = arith.addf %6, %8 : vector<256x128xf32>
    %cst_8 = arith.constant 0.000000e+00 : f32
    %10 = vector.broadcast %cst_8 : f32 to vector<256x128xf32>
    %11 = arith.maximumf %9, %10 : vector<256x128xf32>
    %c1 = arith.constant 1 : index
    %c0_9 = arith.constant 0 : index
    %12 = vector.load %arg3[%c1, %c0_9] : memref<8x128xf32, #tpu.memory_space<vmem>>, vector<1x128xf32>
    %13 = vector.broadcast %12 : vector<1x128xf32> to vector<256x128xf32>
    %14 = arith.mulf %11, %13 : vector<256x128xf32>
    %c2 = arith.constant 2 : index
    %c0_10 = arith.constant 0 : index
    %15 = vector.load %arg3[%c2, %c0_10] : memref<8x128xf32, #tpu.memory_space<vmem>>, vector<1x128xf32>
    %16 = vector.broadcast %15 : vector<1x128xf32> to vector<256x128xf32>
    %17 = arith.addf %14, %16 : vector<256x128xf32>
    %18 = vector.shape_cast %17 : vector<256x128xf32> to vector<16x16x128xf32>
    %19 = vector.shape_cast %18 : vector<16x16x128xf32> to vector<8x2x16x128xf32>
    %20 = vector.extract_strided_slice %19 {offsets = [0, 0, 0, 0], sizes = [8, 1, 16, 128], strides = [1, 1, 1, 1]} : vector<8x2x16x128xf32> to vector<8x1x16x128xf32>
    %21 = vector.shape_cast %20 : vector<8x1x16x128xf32> to vector<8x16x128xf32>
    %22 = vector.extract_strided_slice %19 {offsets = [0, 1, 0, 0], sizes = [8, 1, 16, 128], strides = [1, 1, 1, 1]} : vector<8x2x16x128xf32> to vector<8x1x16x128xf32>
    %23 = vector.shape_cast %22 : vector<8x1x16x128xf32> to vector<8x16x128xf32>
    %24 = arith.maximumf %21, %23 : vector<8x16x128xf32>
    %c0_11 = arith.constant 0 : index
    %c0_12 = arith.constant 0 : index
    %c0_13 = arith.constant 0 : index
    %25 = vector.load %arg4[%c0_11, %c0_12, %c0_13] : memref<8x16x128xf32, #tpu.memory_space<vmem>>, vector<8x16x128xf32>
    tpu.vector_store %arg4[%c0_11, %c0_12, %c0_13], %24 {strides = array<i32>} : memref<8x16x128xf32, #tpu.memory_space<vmem>>, vector<8x16x128xf32>,
    return
  }
  func.func @transform_0(%arg0: i32) -> (i32, i32, i32) {
    %c0_i32 = arith.constant 0 : i32
    %c0_i32_0 = arith.constant 0 : i32
    %c0_i32_1 = arith.constant 0 : i32
    return %c0_i32, %arg0, %c0_i32_0 : i32, i32, i32
  }
  func.func @transform_1(%arg0: i32) -> (i32, i32, i32) {
    %c0_i32 = arith.constant 0 : i32
    %c0_i32_0 = arith.constant 0 : i32
    %c0_i32_1 = arith.constant 0 : i32
    %c0_i32_2 = arith.constant 0 : i32
    return %c0_i32, %c0_i32_0, %c0_i32_1 : i32, i32, i32
  }
  func.func @transform_2(%arg0: i32) -> (i32, i32) {
    %c0_i32 = arith.constant 0 : i32
    %c0_i32_0 = arith.constant 0 : i32
    %c0_i32_1 = arith.constant 0 : i32
    return %c0_i32, %c0_i32_0 : i32, i32
  }
  func.func @transform_3(%arg0: i32) -> (i32, i32, i32) {
    %c0_i32 = arith.constant 0 : i32
    %c0_i32_0 = arith.constant 0 : i32
    %c0_i32_1 = arith.constant 0 : i32
    return %c0_i32, %arg0, %c0_i32_0 : i32, i32, i32
  }
}

module attributes {stable_mosaic.version = 11 : i64} {
  func.func @_conv_block_kernel(%arg0: i32, %arg1: memref<16x16x20xbf16, #tpu.memory_space<vmem>>, %arg2: memref<1x20x128xbf16, #tpu.memory_space<vmem>>, %arg3: memref<8x128xf32, #tpu.memory_space<vmem>>, %arg4: memref<8x16x128xf32, #tpu.memory_space<vmem>>) attributes {dimension_semantics = [#tpu.dimension_semantics<parallel>], iteration_bounds = array<i64: 1>, scalar_prefetch = 0 : i64, scratch_operands = 0 : i64, tpu.core_type = #tpu.core_type<tc>, window_params = [{transform_indices = @transform_0, window_bounds = array<i64: 16, 16, 20>}, {pipeline_mode = #tpu.pipeline_mode<synchronous>, transform_indices = @transform_1, window_bounds = array<i64: 1, 20, 128>}, {pipeline_mode = #tpu.pipeline_mode<synchronous>, transform_indices = @transform_2, window_bounds = array<i64: 8, 128>}, {transform_indices = @transform_3, window_bounds = array<i64: 8, 16, 128>}]} {
    %cst = arith.constant 0.000000e+00 : f32
    %0 = vector.broadcast %cst : f32 to vector<256x128xf32>
    %c0 = arith.constant 0 : index
    %c0_0 = arith.constant 0 : index
    %c0_1 = arith.constant 0 : index
    %1 = vector.load %arg1[%c0, %c0_0, %c0_1] : memref<16x16x20xbf16, #tpu.memory_space<vmem>>, vector<16x16x20xbf16>
    %2 = vector.shape_cast %1 : vector<16x16x20xbf16> to vector<256x20xbf16>
    %c0_2 = arith.constant 0 : index
    %c0_3 = arith.constant 0 : index
    %c0_4 = arith.constant 0 : index
    %3 = vector.load %arg2[%c0_2, %c0_3, %c0_4] : memref<1x20x128xbf16, #tpu.memory_space<vmem>>, vector<1x20x128xbf16>
    %4 = vector.shape_cast %3 : vector<1x20x128xbf16> to vector<20x128xbf16>
    %cst_5 = arith.constant dense<0.000000e+00> : vector<256x128xf32>
    %5 = tpu.matmul %2, %4, %cst_5 {dimension_numbers = #tpu.dot_dimension_numbers<[1], [0], [0], [1], [0, 0, 1, 1], [], []>} : vector<256x20xbf16>, vector<20x128xbf16>, vector<256x128xf32> -> vector<256x128xf32>
    %6 = arith.addf %0, %5 : vector<256x128xf32>
    %c0_6 = arith.constant 0 : index
    %c0_7 = arith.constant 0 : index
    %7 = vector.load %arg3[%c0_6, %c0_7] : memref<8x128xf32, #tpu.memory_space<vmem>>, vector<1x128xf32>
    %8 = vector.broadcast %7 : vector<1x128xf32> to vector<256x128xf32>
    %9 = arith.addf %6, %8 : vector<256x128xf32>
    %cst_8 = arith.constant 0.000000e+00 : f32
    %10 = vector.broadcast %cst_8 : f32 to vector<256x128xf32>
    %11 = arith.maximumf %9, %10 : vector<256x128xf32>
    %c1 = arith.constant 1 : index
    %c0_9 = arith.constant 0 : index
    %12 = vector.load %arg3[%c1, %c0_9] : memref<8x128xf32, #tpu.memory_space<vmem>>, vector<1x128xf32>
    %13 = vector.broadcast %12 : vector<1x128xf32> to vector<256x128xf32>
    %14 = arith.mulf %11, %13 : vector<256x128xf32>
    %c2 = arith.constant 2 : index
    %c0_10 = arith.constant 0 : index
    %15 = vector.load %arg3[%c2, %c0_10] : memref<8x128xf32, #tpu.memory_space<vmem>>, vector<1x128xf32>
    %16 = vector.broadcast %15 : vector<1x128xf32> to vector<256x128xf32>
    %17 = arith.addf %14, %16 : vector<256x128xf32>
    %18 = vector.shape_cast %17 : vector<256x128xf32> to vector<16x16x128xf32>
    %19 = vector.shape_cast %18 : vector<16x16x128xf32> to vector<8x2x16x128xf32>
    %20 = vector.extract_strided_slice %19 {offsets = [0, 0, 0, 0], sizes = [8, 1, 16, 128], strides = [1, 1, 1, 1]} : vector<8x2x16x128xf32> to vector<8x1x16x128xf32>
    %21 = vector.shape_cast %20 : vector<8x1x16x128xf32> to vector<8x16x128xf32>
    %22 = vector.extract_strided_slice %19 {offsets = [0, 1, 0, 0], sizes = [8, 1, 16, 128], strides = [1, 1, 1, 1]} : vector<8x2x16x128xf32> to vector<8x1x16x128xf32>
    %23 = vector.shape_cast %22 : vector<8x1x16x128xf32> to vector<8x16x128xf32>
    %24 = arith.maximumf %21, %23 : vector<8x16x128xf32>
    %c0_11 = arith.constant 0 : index
    %c0_12 = arith.constant 0 : index
    %c0_13 = arith.constant 0 : index
    %25 = vector.load %arg4[%c0_11, %c0_12, %c0_13] : memref<8x16x128xf32, #tpu.memory_space<vmem>>, vector<8x16x128xf32>
    tpu.vector_store %arg4[%c0_11, %c0_12, %c0_13], %24 {strides = array<i32>} : memref<8x16x128xf32, #tpu.memory_space<vmem>>, vector<8x16x128xf32>,
    return
  }
  func.func @transform_0(%arg0: i32) -> (i32, i32, i32) {
    %c0_i32 = arith.constant 0 : i32
    %c0_i32_0 = arith.constant 0 : i32
    %c0_i32_1 = arith.constant 0 : i32
    return %c0_i32, %arg0, %c0_i32_0 : i32, i32, i32
  }
  func.func @transform_1(%arg0: i32) -> (i32, i32, i32) {
    %c0_i32 = arith.constant 0 : i32
    %c0_i32_0 = arith.constant 0 : i32
    %c0_i32_1 = arith.constant 0 : i32
    %c0_i32_2 = arith.constant 0 : i32
    return %c0_i32, %c0_i32_0, %c0_i32_1 : i32, i32, i32
  }
  func.func @transform_2(%arg0: i32) -> (i32, i32) {
    %c0_i32 = arith.constant 0 : i32
    %c0_i32_0 = arith.constant 0 : i32
    %c0_i32_1 = arith.constant 0 : i32
    return %c0_i32, %c0_i32_0 : i32, i32
  }
  func.func @transform_3(%arg0: i32) -> (i32, i32, i32) {
    %c0_i32 = arith.constant 0 : i32
    %c0_i32_0 = arith.constant 0 : i32
    %c0_i32_1 = arith.constant 0 : i32
    return %c0_i32, %arg0, %c0_i32_0 : i32, i32, i32
  }
}

</mosaic_0001>

<llo_original>
// kernel: tpu_custom_call.1
$region0: #{tpu_custom_call.1}
  #allocation0 [shape = 'u32[]', space=smem, size = 0x4, offset = 0x4, fixed_abs, tag = 'smem constant byte address 0x4 - core index']
  #allocation1 [shape = 'u32[144,128]{1,0:T(1,128)}', space=vmem, size = 0x12000, scoped, tag = 'internal scratch']
  %s0 = inlined_call_operand.hbm [shape: bf16[16,16,20], index: 0, kind: input, shape index: {}]
  %s1 = inlined_call_operand.hbm [shape: bf16[1,20,128], index: 1, kind: input, shape index: {}]
  %s2 = inlined_call_operand.hbm [shape: f32[8,128], index: 2, kind: input, shape index: {}]
  %s3 = inlined_call_operand.hbm [shape: f32[8,16,128], index: 3, kind: output, shape index: {}]
  %s4 = sld [smem:[#allocation0]]
  $region34: #{tpu_custom_call.1} parent=0
    _
  %s6 = ssub.s32 1, %s4
  %s7 = scalar_select 0, %s6, %s4
  $region1: #{tpu_custom_call.1} parent=0
    #allocation2 [shape = 'u8[65536]{0}', space=vmem, size = 0x10000, scoped, tag = 'input window, operand 0, single buffered']
    #allocation3 [shape = 's32[1]{0}', space=sflag, size = 0x4, scoped, tag = 'scoped memory for tpu_custom_call.1']
    #allocation4 [shape = 's32[1]{0}', space=sflag, size = 0x4, scoped, tag = 'scoped memory for tpu_custom_call.1']
    #allocation5 [shape = 'u8[6144]{0}', space=vmem, size = 0x1800, scoped, tag = 'input window, operand 1, single buffered']
    #allocation6 [shape = 's32[1]{0}', space=sflag, size = 0x4, scoped, tag = 'scoped memory for tpu_custom_call.1']
    #allocation7 [shape = 'u8[4096]{0}', space=vmem, size = 0x1000, scoped, tag = 'input window, operand 2, single buffered']
    #allocation8 [shape = 'u8[65536]{0}', space=vmem, size = 0x10000, scoped, tag = 'output window, operand 0, single buffered']
    %8 = vsyncpa [#allocation3], 0
    %9 = vsyncpa [#allocation6], 0
    %10 = vsyncpa [#allocation4], 0
    // Predicated region
    $region2: #{tpu_custom_call.1} parent=1 // pred_check
      _
    $region3: #{tpu_custom_call.1} parent=1 // pred_check_branch
      %12 = sbr.rel (0) target = $region5
    $region4: #{tpu_custom_call.1} parent=1 // pred_region
      %s14 = ssub.s32 2048, 2048
      %15 = vsyncadd [#allocation3], %s14
      %s16 = sshll.u32 [#allocation2], 4
      %s17 = int_to_ptr.vmem [resolvable:$true] %s16
      %22 = dma.hbm_to_vmem [thread:$0]  %s0, 2048, %s17, [#allocation3], 64, 64, 4
    $region5: #{tpu_custom_call.1} parent=1 // pred_fallthru
      _
    // Predicated region
    $region6: #{tpu_custom_call.1} parent=1 // pred_check
      _
    $region7: #{tpu_custom_call.1} parent=1 // pred_check_branch
      %24 = sbr.rel (0) target = $region9
    $region8: #{tpu_custom_call.1} parent=1 // pred_region
      %s26 = ssub.s32 192, 192
      %27 = vsyncadd [#allocation6], %s26
      %s28 = sshll.u32 [#allocation5], 4
      %s29 = int_to_ptr.vmem [resolvable:$true] %s28
      %34 = dma.hbm_to_vmem [thread:$0]  %s1, 192, %s29, [#allocation6], 64, 64, 4
    $region9: #{tpu_custom_call.1} parent=1 // pred_fallthru
      _
    // Predicated region
    $region10: #{tpu_custom_call.1} parent=1 // pred_check
      _
    $region11: #{tpu_custom_call.1} parent=1 // pred_check_branch
      %36 = sbr.rel (0) target = $region13
    $region12: #{tpu_custom_call.1} parent=1 // pred_region
      %s38 = ssub.s32 128, 128
      %39 = vsyncadd [#allocation6], %s38
      %s41 = sshll.u32 [#allocation7], 4
      %s42 = int_to_ptr.vmem [resolvable:$true] %s41
      %44 = dma.hbm_to_vmem [thread:$0]  %s2, 128, %s42, [#allocation6]
    $region13: #{tpu_custom_call.1} parent=1 // pred_fallthru
      _
    // Predicated region
    $region14: #{tpu_custom_call.1} parent=1 // pred_check
      _
    $region15: #{tpu_custom_call.1} parent=1 // pred_check_branch
      %46 = sbr.rel (0) target = $region17
    $region16: #{tpu_custom_call.1} parent=1 // pred_region
      %47 = dma.done [#allocation3], 2048
    $region17: #{tpu_custom_call.1} parent=1 // pred_fallthru
      _
    // Predicated region
    $region18: #{tpu_custom_call.1} parent=1 // pred_check
      _
    $region19: #{tpu_custom_call.1} parent=1 // pred_check_branch
      %49 = sbr.rel (0) target = $region21
    $region20: #{tpu_custom_call.1} parent=1 // pred_region
      %50 = dma.done [#allocation6], 192
    $region21: #{tpu_custom_call.1} parent=1 // pred_fallthru
      _
    // Predicated region
    $region22: #{tpu_custom_call.1} parent=1 // pred_check
      _
    $region23: #{tpu_custom_call.1} parent=1 // pred_check_branch
      %52 = sbr.rel (0) target = $region25
    $region24: #{tpu_custom_call.1} parent=1 // pred_region
      %53 = dma.done [#allocation6], 128
    $region25: #{tpu_custom_call.1} parent=1 // pred_fallthru
      _
    %v55 = vld [vmem:[#allocation2] sm:$0xf]
    %v56 = vld [vmem:[#allocation2 + $0x4] sm:$0xf]
    %v57 = vld [vmem:[#allocation2 + $0x8] sm:$0xf]
    %v58 = vld [vmem:[#allocation2 + $0xc] sm:$0xf]
    %v59 = vld [vmem:[#allocation2 + $0x10] sm:$0xf]
    %v60 = vld [vmem:[#allocation2 + $0x14] sm:$0xf]
    %v61 = vld [vmem:[#allocation2 + $0x18] sm:$0xf]
    %v62 = vld [vmem:[#allocation2 + $0x1c] sm:$0xf]
    %v63 = vld [vmem:[#allocation2 + $0x20] sm:$0xf]
    %v64 = vld [vmem:[#allocation2 + $0x24] sm:$0xf]
    %v65 = vld [vmem:[#allocation2 + $0x28] sm:$0xf]
    %v66 = vld [vmem:[#allocation2 + $0x2c] sm:$0xf]
    %v67 = vld [vmem:[#allocation2 + $0x30] sm:$0xf]
    %v68 = vld [vmem:[#allocation2 + $0x34] sm:$0xf]
    %v69 = vld [vmem:[#allocation2 + $0x38] sm:$0xf]
    %v70 = vld [vmem:[#allocation2 + $0x3c] sm:$0xf]
    %v71 = vld [vmem:[#allocation2 + $0x40] sm:$0xf]
    %v72 = vld [vmem:[#allocation2 + $0x44] sm:$0xf]
    %v73 = vld [vmem:[#allocation2 + $0x48] sm:$0xf]
    %v74 = vld [vmem:[#allocation2 + $0x4c] sm:$0xf]
    %v75 = vld [vmem:[#allocation2 + $0x50] sm:$0xf]
    %v76 = vld [vmem:[#allocation2 + $0x54] sm:$0xf]
    %v77 = vld [vmem:[#allocation2 + $0x58] sm:$0xf]
    %v78 = vld [vmem:[#allocation2 + $0x5c] sm:$0xf]
    %v79 = vld [vmem:[#allocation2 + $0x60] sm:$0xf]
    %v80 = vld [vmem:[#allocation2 + $0x64] sm:$0xf]
    %v81 = vld [vmem:[#allocation2 + $0x68] sm:$0xf]
    %v82 = vld [vmem:[#allocation2 + $0x6c] sm:$0xf]
    %v83 = vld [vmem:[#allocation2 + $0x70] sm:$0xf]
    %v84 = vld [vmem:[#allocation2 + $0x74] sm:$0xf]
    %v85 = vld [vmem:[#allocation2 + $0x78] sm:$0xf]
    %v86 = vld [vmem:[#allocation2 + $0x7c] sm:$0xf]
    %v87 = vld [vmem:[#allocation5] sm:$0xf]
    %v88 = vld [vmem:[#allocation5 + $0x4] sm:$0xf]
    %v89 = vld [vmem:[#allocation5 + $0x8] sm:$0x3]
    %v90 = vld [vmem:[#allocation7] sm:$0x1]
    %v91 = vlaneseq
    %v92 = vshrl.u32 %v91, 7
    %v93 = vsub.s32 0, %v92
    %v94 = vrot.slane %v90, %v93
    %v127 = vunpack.c.l.b16 %v55
    %v128 = vunpack.c.l.b16 %v56
    %v129 = vunpack.c.l.b16 %v57
    %v130 = vunpack.c.l.b16 %v58
    %v131 = vunpack.c.l.b16 %v59
    %v132 = vunpack.c.l.b16 %v60
    %v133 = vunpack.c.l.b16 %v61
    %v134 = vunpack.c.l.b16 %v62
    %v135 = vunpack.c.l.b16 %v63
    %v136 = vunpack.c.l.b16 %v64
    %v137 = vunpack.c.l.b16 %v65
    %v138 = vunpack.c.l.b16 %v66
    %v139 = vunpack.c.l.b16 %v67
    %v140 = vunpack.c.l.b16 %v68
    %v141 = vunpack.c.l.b16 %v69
    %v142 = vunpack.c.l.b16 %v70
    %v143 = vunpack.c.l.b16 %v71
    %v144 = vunpack.c.l.b16 %v72
    %v145 = vunpack.c.l.b16 %v73
    %v146 = vunpack.c.l.b16 %v74
    %v147 = vunpack.c.l.b16 %v75
    %v148 = vunpack.c.l.b16 %v76
    %v149 = vunpack.c.l.b16 %v77
    %v150 = vunpack.c.l.b16 %v78
    %v151 = vunpack.c.l.b16 %v79
    %v152 = vunpack.c.l.b16 %v80
    %v153 = vunpack.c.l.b16 %v81
    %v154 = vunpack.c.l.b16 %v82
    %v155 = vunpack.c.l.b16 %v83
    %v156 = vunpack.c.l.b16 %v84
    %v157 = vunpack.c.l.b16 %v85
    %v158 = vunpack.c.l.b16 %v86
    %v159 = vpack.c.b16 %v128, %v127
    %v160 = vpack.c.b16 %v130, %v129
    %v161 = vpack.c.b16 %v132, %v131
    %v162 = vpack.c.b16 %v134, %v133
    %v163 = vpack.c.b16 %v136, %v135
    %v164 = vpack.c.b16 %v138, %v137
    %v165 = vpack.c.b16 %v140, %v139
    %v166 = vpack.c.b16 %v142, %v141
    %v167 = vpack.c.b16 %v144, %v143
    %v168 = vpack.c.b16 %v146, %v145
    %v169 = vpack.c.b16 %v148, %v147
    %v170 = vpack.c.b16 %v150, %v149
    %v171 = vpack.c.b16 %v152, %v151
    %v172 = vpack.c.b16 %v154, %v153
    %v173 = vpack.c.b16 %v156, %v155
    %v174 = vpack.c.b16 %v158, %v157
    %v178 = vunpack.c.l.b16 %v87
    %v179 = vunpack.c.l.b16 %v88
    %v180 = vunpack.c.l.b16 %v89
    %v181 = vpack.c.b16 %v179, %v178
    %v182 = vpack.c.b16 %v180, %v180
    %vm184 = vcmask 162816
    %v186 = vsel %vm184, %v159, 0
    %v189 = vsel %vm184, %v160, 0
    %v192 = vsel %vm184, %v161, 0
    %v195 = vsel %vm184, %v162, 0
    %v198 = vsel %vm184, %v163, 0
    %v201 = vsel %vm184, %v164, 0
    %v204 = vsel %vm184, %v165, 0
    %v207 = vsel %vm184, %v166, 0
    %v210 = vsel %vm184, %v167, 0
    %v213 = vsel %vm184, %v168, 0
    %v216 = vsel %vm184, %v169, 0
    %v219 = vsel %vm184, %v170, 0
    %v222 = vsel %vm184, %v171, 0
    %v225 = vsel %vm184, %v172, 0
    %v228 = vsel %vm184, %v173, 0
    %v231 = vsel %vm184, %v174, 0
    %vm233 = vcmask 1041408
    %v235 = vsel %vm233, %v182, 0
    %237 = vmatprep.subr.bf16.mxu0 0
    %238 = vmatpush1.bf16.msra.mxu0 %v181
    %239 = vmatprep.subr.bf16.mxu0 0
    %240 = vmatpush1.bf16.msra.mxu0 %v235
    %241 = vmatprep.subr.bf16.mxu0 0
    %242 = vmatpush1.bf16.msra.mxu0 0
    %243 = vmatprep.subr.bf16.mxu0 0
    %244 = vmatpush1.bf16.msra.mxu0 0
    %245 = vmatprep.subr.bf16.mxu0 0
    %246 = vmatpush1.bf16.msra.mxu0 0
    %247 = vmatprep.subr.bf16.mxu0 0
    %248 = vmatpush1.bf16.msra.mxu0 0
    %249 = vmatprep.subr.bf16.mxu0 0
    %250 = vmatpush1.bf16.msra.mxu0 0
    %251 = vmatprep.subr.bf16.mxu0 0
    %252 = vmatpush1.bf16.msra.mxu0 0
    %253 = vmatprep.subr.bf16.mxu0 0
    %254 = vmatpush1.bf16.msra.mxu0 0
    %255 = vmatprep.subr.bf16.mxu0 0
    %256 = vmatpush1.bf16.msra.mxu0 0
    %257 = vmatprep.subr.bf16.mxu0 0
    %258 = vmatpush1.bf16.msra.mxu0 0
    %259 = vmatprep.subr.bf16.mxu0 0
    %260 = vmatpush1.bf16.msra.mxu0 0
    %261 = vmatprep.subr.bf16.mxu0 0
    %262 = vmatpush1.bf16.msra.mxu0 0
    %263 = vmatprep.subr.bf16.mxu0 0
    %264 = vmatpush1.bf16.msra.mxu0 0
    %265 = vmatprep.subr.bf16.mxu0 0
    %266 = vmatpush1.bf16.msra.mxu0 0
    %267 = vmatprep.subr.bf16.mxu0 0
    %268 = vmatpush1.bf16.msra.mxu0 0
    %269 = vmatprep.mubr.bf16.mxu0 0
    %270 = vmatmul.mubr.bf16.gmra.mrb[0].mxu0 %v186
    %v271 = vpop.f32.mrb[0].mxu0
    %v272 = vadd.f32 %v94, %v271
    %v273 = vpop.f32.mrb[0].mxu0
    %v274 = vpop.f32.mrb[0].mxu0
    %v275 = vadd.f32 %v94, %v274
    %v276 = vpop.f32.mrb[0].mxu0
    %277 = vmatprep.mubr.bf16.mxu0 0
    %278 = vmatmul.mubr.bf16.gmra.mrb[0].mxu0 %v189
    %v279 = vpop.f32.mrb[0].mxu0
    %v280 = vadd.f32 %v94, %v279
    %v281 = vpop.f32.mrb[0].mxu0
    %v282 = vpop.f32.mrb[0].mxu0
    %v283 = vadd.f32 %v94, %v282
    %v284 = vpop.f32.mrb[0].mxu0
    %285 = vmatprep.mubr.bf16.mxu0 0
    %286 = vmatmul.mubr.bf16.gmra.mrb[0].mxu0 %v192
    %v287 = vpop.f32.mrb[0].mxu0
    %v288 = vadd.f32 %v94, %v287
    %v289 = vpop.f32.mrb[0].mxu0
    %v290 = vpop.f32.mrb[0].mxu0
    %v291 = vadd.f32 %v94, %v290
    %v292 = vpop.f32.mrb[0].mxu0
    %293 = vmatprep.mubr.bf16.mxu0 0
    %294 = vmatmul.mubr.bf16.gmra.mrb[0].mxu0 %v195
    %v295 = vpop.f32.mrb[0].mxu0
    %v296 = vadd.f32 %v94, %v295
    %v297 = vpop.f32.mrb[0].mxu0
    %v298 = vpop.f32.mrb[0].mxu0
    %v299 = vadd.f32 %v94, %v298
    %v300 = vpop.f32.mrb[0].mxu0
    %301 = vmatprep.mubr.bf16.mxu0 0
    %302 = vmatmul.mubr.bf16.gmra.mrb[0].mxu0 %v198
    %v303 = vpop.f32.mrb[0].mxu0
    %v304 = vadd.f32 %v94, %v303
    %v305 = vpop.f32.mrb[0].mxu0
    %v306 = vpop.f32.mrb[0].mxu0
    %v307 = vadd.f32 %v94, %v306
    %v308 = vpop.f32.mrb[0].mxu0
    %309 = vmatprep.mubr.bf16.mxu0 0
    %310 = vmatmul.mubr.bf16.gmra.mrb[0].mxu0 %v201
    %v311 = vpop.f32.mrb[0].mxu0
    %v312 = vadd.f32 %v94, %v311
    %v313 = vpop.f32.mrb[0].mxu0
    %v314 = vpop.f32.mrb[0].mxu0
    %v315 = vadd.f32 %v94, %v314
    %v316 = vpop.f32.mrb[0].mxu0
    %317 = vmatprep.mubr.bf16.mxu0 0
    %318 = vmatmul.mubr.bf16.gmra.mrb[0].mxu0 %v204
    %v319 = vpop.f32.mrb[0].mxu0
    %v320 = vadd.f32 %v94, %v319
    %v321 = vpop.f32.mrb[0].mxu0
    %v322 = vpop.f32.mrb[0].mxu0
    %v323 = vadd.f32 %v94, %v322
    %v324 = vpop.f32.mrb[0].mxu0
    %325 = vmatprep.mubr.bf16.mxu0 0
    %326 = vmatmul.mubr.bf16.gmra.mrb[0].mxu0 %v207
    %v327 = vpop.f32.mrb[0].mxu0
    %v328 = vadd.f32 %v94, %v327
    %v329 = vpop.f32.mrb[0].mxu0
    %v330 = vpop.f32.mrb[0].mxu0
    %v331 = vadd.f32 %v94, %v330
    %v332 = vpop.f32.mrb[0].mxu0
    %333 = vmatprep.mubr.bf16.mxu0 0
    %334 = vmatmul.mubr.bf16.gmra.mrb[0].mxu0 %v210
    %v335 = vpop.f32.mrb[0].mxu0
    %v336 = vadd.f32 %v94, %v335
    %v337 = vpop.f32.mrb[0].mxu0
    %v338 = vpop.f32.mrb[0].mxu0
    %v339 = vadd.f32 %v94, %v338
    %v340 = vpop.f32.mrb[0].mxu0
    %341 = vmatprep.mubr.bf16.mxu0 0
    %342 = vmatmul.mubr.bf16.gmra.mrb[0].mxu0 %v213
    %v343 = vpop.f32.mrb[0].mxu0
    %v344 = vadd.f32 %v94, %v343
    %v345 = vpop.f32.mrb[0].mxu0
    %v346 = vpop.f32.mrb[0].mxu0
    %v347 = vadd.f32 %v94, %v346
    %v348 = vpop.f32.mrb[0].mxu0
    %349 = vmatprep.mubr.bf16.mxu0 0
    %350 = vmatmul.mubr.bf16.gmra.mrb[0].mxu0 %v216
    %v351 = vpop.f32.mrb[0].mxu0
    %v352 = vadd.f32 %v94, %v351
    %v353 = vpop.f32.mrb[0].mxu0
    %v354 = vpop.f32.mrb[0].mxu0
    %v355 = vadd.f32 %v94, %v354
    %v356 = vpop.f32.mrb[0].mxu0
    %357 = vmatprep.mubr.bf16.mxu0 0
    %358 = vmatmul.mubr.bf16.gmra.mrb[0].mxu0 %v219
    %v359 = vpop.f32.mrb[0].mxu0
    %v360 = vadd.f32 %v94, %v359
    %v361 = vpop.f32.mrb[0].mxu0
    %v362 = vpop.f32.mrb[0].mxu0
    %v363 = vadd.f32 %v94, %v362
    %v364 = vpop.f32.mrb[0].mxu0
    %365 = vmatprep.mubr.bf16.mxu0 0
    %366 = vmatmul.mubr.bf16.gmra.mrb[0].mxu0 %v222
    %v367 = vpop.f32.mrb[0].mxu0
    %v368 = vadd.f32 %v94, %v367
    %v369 = vpop.f32.mrb[0].mxu0
    %v370 = vpop.f32.mrb[0].mxu0
    %v371 = vadd.f32 %v94, %v370
    %v372 = vpop.f32.mrb[0].mxu0
    %373 = vmatprep.mubr.bf16.mxu0 0
    %374 = vmatmul.mubr.bf16.gmra.mrb[0].mxu0 %v225
    %v375 = vpop.f32.mrb[0].mxu0
    %v376 = vadd.f32 %v94, %v375
    %v377 = vpop.f32.mrb[0].mxu0
    %v378 = vpop.f32.mrb[0].mxu0
    %v379 = vadd.f32 %v94, %v378
    %v380 = vpop.f32.mrb[0].mxu0
    %381 = vmatprep.mubr.bf16.mxu0 0
    %382 = vmatmul.mubr.bf16.gmra.mrb[0].mxu0 %v228
    %v383 = vpop.f32.mrb[0].mxu0
    %v384 = vadd.f32 %v94, %v383
    %v385 = vpop.f32.mrb[0].mxu0
    %v386 = vpop.f32.mrb[0].mxu0
    %v387 = vadd.f32 %v94, %v386
    %v388 = vpop.f32.mrb[0].mxu0
    %389 = vmatprep.mubr.bf16.mxu0 0
    %390 = vmatmul.mubr.bf16.gmra.mrb[0].mxu0 %v231
    %v391 = vpop.f32.mrb[0].mxu0
    %v392 = vadd.f32 %v94, %v391
    %v393 = vpop.f32.mrb[0].mxu0
    %v394 = vpop.f32.mrb[0].mxu0
    %v395 = vadd.f32 %v94, %v394
    %v396 = vpop.f32.mrb[0].mxu0
    %397 = vdwg.mxu0
    %v398 = vmax.f32 %v272, 0.0
    %v399 = vmax.f32 %v275, 0.0
    %v400 = vmax.f32 %v280, 0.0
    %v401 = vmax.f32 %v283, 0.0
    %v402 = vmax.f32 %v288, 0.0
    %v403 = vmax.f32 %v291, 0.0
    %v404 = vmax.f32 %v296, 0.0
    %v405 = vmax.f32 %v299, 0.0
    %v406 = vmax.f32 %v304, 0.0
    %v407 = vmax.f32 %v307, 0.0
    %v408 = vmax.f32 %v312, 0.0
    %v409 = vmax.f32 %v315, 0.0
    %v410 = vmax.f32 %v320, 0.0
    %v411 = vmax.f32 %v323, 0.0
    %v412 = vmax.f32 %v328, 0.0
    %v413 = vmax.f32 %v331, 0.0
    %v414 = vmax.f32 %v336, 0.0
    %v415 = vmax.f32 %v339, 0.0
    %v416 = vmax.f32 %v344, 0.0
    %v417 = vmax.f32 %v347, 0.0
    %v418 = vmax.f32 %v352, 0.0
    %v419 = vmax.f32 %v355, 0.0
    %v420 = vmax.f32 %v360, 0.0
    %v421 = vmax.f32 %v363, 0.0
    %v422 = vmax.f32 %v368, 0.0
    %v423 = vmax.f32 %v371, 0.0
    %v424 = vmax.f32 %v376, 0.0
    %v425 = vmax.f32 %v379, 0.0
    %v426 = vmax.f32 %v384, 0.0
    %v427 = vmax.f32 %v387, 0.0
    %v428 = vmax.f32 %v392, 0.0
    %v429 = vmax.f32 %v395, 0.0
    %v430 = vld [vmem:[#allocation7 + $0x1] sm:$0x1]
    %v431 = vlaneseq
    %v432 = vshrl.u32 %v431, 7
    %v433 = vsub.s32 0, %v432
    %v434 = vrot.slane %v430, %v433
    %v435 = vmul.f32 %v398, %v434
    %v436 = vmul.f32 %v399, %v434
    %v437 = vmul.f32 %v400, %v434
    %v438 = vmul.f32 %v401, %v434
    %v439 = vmul.f32 %v402, %v434
    %v440 = vmul.f32 %v403, %v434
    %v441 = vmul.f32 %v404, %v434
    %v442 = vmul.f32 %v405, %v434
    %v443 = vmul.f32 %v406, %v434
    %v444 = vmul.f32 %v407, %v434
    %v445 = vmul.f32 %v408, %v434
    %v446 = vmul.f32 %v409, %v434
    %v447 = vmul.f32 %v410, %v434
    %v448 = vmul.f32 %v411, %v434
    %v449 = vmul.f32 %v412, %v434
    %v450 = vmul.f32 %v413, %v434
    %v451 = vmul.f32 %v414, %v434
    %v452 = vmul.f32 %v415, %v434
    %v453 = vmul.f32 %v416, %v434
    %v454 = vmul.f32 %v417, %v434
    %v455 = vmul.f32 %v418, %v434
    %v456 = vmul.f32 %v419, %v434
    %v457 = vmul.f32 %v420, %v434
    %v458 = vmul.f32 %v421, %v434
    %v459 = vmul.f32 %v422, %v434
    %v460 = vmul.f32 %v423, %v434
    %v461 = vmul.f32 %v424, %v434
    %v462 = vmul.f32 %v425, %v434
    %v463 = vmul.f32 %v426, %v434
    %v464 = vmul.f32 %v427, %v434
    %v465 = vmul.f32 %v428, %v434
    %v466 = vmul.f32 %v429, %v434
    %v467 = vld [vmem:[#allocation7 + $0x2] sm:$0x1]
    %v468 = vlaneseq
    %v469 = vshrl.u32 %v468, 7
    %v470 = vsub.s32 0, %v469
    %v471 = vrot.slane %v467, %v470
    %v472 = vadd.f32 %v435, %v471
    %v473 = vadd.f32 %v436, %v471
    %v474 = vadd.f32 %v437, %v471
    %v475 = vadd.f32 %v438, %v471
    %v476 = vadd.f32 %v439, %v471
    %v477 = vadd.f32 %v440, %v471
    %v478 = vadd.f32 %v441, %v471
    %v479 = vadd.f32 %v442, %v471
    %v480 = vadd.f32 %v443, %v471
    %v481 = vadd.f32 %v444, %v471
    %v482 = vadd.f32 %v445, %v471
    %v483 = vadd.f32 %v446, %v471
    %v484 = vadd.f32 %v447, %v471
    %v485 = vadd.f32 %v448, %v471
    %v486 = vadd.f32 %v449, %v471
    %v487 = vadd.f32 %v450, %v471
    %v488 = vadd.f32 %v451, %v471
    %v489 = vadd.f32 %v452, %v471
    %v490 = vadd.f32 %v453, %v471
    %v491 = vadd.f32 %v454, %v471
    %v492 = vadd.f32 %v455, %v471
    %v493 = vadd.f32 %v456, %v471
    %v494 = vadd.f32 %v457, %v471
    %v495 = vadd.f32 %v458, %v471
    %v496 = vadd.f32 %v459, %v471
    %v497 = vadd.f32 %v460, %v471
    %v498 = vadd.f32 %v461, %v471
    %v499 = vadd.f32 %v462, %v471
    %v500 = vadd.f32 %v463, %v471
    %v501 = vadd.f32 %v464, %v471
    %v502 = vadd.f32 %v465, %v471
    %v503 = vadd.f32 %v466, %v471
    %v504 = vmax.f32 %v472, %v474
    %v505 = vmax.f32 %v473, %v475
    %v506 = vmax.f32 %v476, %v478
    %v507 = vmax.f32 %v477, %v479
    %v508 = vmax.f32 %v480, %v482
    %v509 = vmax.f32 %v481, %v483
    %v510 = vmax.f32 %v484, %v486
    %v511 = vmax.f32 %v485, %v487
    %v512 = vmax.f32 %v488, %v490
    %v513 = vmax.f32 %v489, %v491
    %v514 = vmax.f32 %v492, %v494
    %v515 = vmax.f32 %v493, %v495
    %v516 = vmax.f32 %v496, %v498
    %v517 = vmax.f32 %v497, %v499
    %v518 = vmax.f32 %v500, %v502
    %v519 = vmax.f32 %v501, %v503
    %520 = vst [vmem:[#allocation8] sm:$0xff] %v504
    %521 = vst [vmem:[#allocation8 + $0x8] sm:$0xff] %v505
    %522 = vst [vmem:[#allocation8 + $0x10] sm:$0xff] %v506
    %523 = vst [vmem:[#allocation8 + $0x18] sm:$0xff] %v507
    %524 = vst [vmem:[#allocation8 + $0x20] sm:$0xff] %v508
    %525 = vst [vmem:[#allocation8 + $0x28] sm:$0xff] %v509
    %526 = vst [vmem:[#allocation8 + $0x30] sm:$0xff] %v510
    %527 = vst [vmem:[#allocation8 + $0x38] sm:$0xff] %v511
    %528 = vst [vmem:[#allocation8 + $0x40] sm:$0xff] %v512
    %529 = vst [vmem:[#allocation8 + $0x48] sm:$0xff] %v513
    %530 = vst [vmem:[#allocation8 + $0x50] sm:$0xff] %v514
    %531 = vst [vmem:[#allocation8 + $0x58] sm:$0xff] %v515
    %532 = vst [vmem:[#allocation8 + $0x60] sm:$0xff] %v516
    %533 = vst [vmem:[#allocation8 + $0x68] sm:$0xff] %v517
    %534 = vst [vmem:[#allocation8 + $0x70] sm:$0xff] %v518
    %535 = vst [vmem:[#allocation8 + $0x78] sm:$0xff] %v519
    // Predicated region
    $region26: #{tpu_custom_call.1} parent=1 // pred_check
      _
    $region27: #{tpu_custom_call.1} parent=1 // pred_check_branch
      %537 = sbr.rel (0) target = $region29
    $region28: #{tpu_custom_call.1} parent=1 // pred_region
      %s539 = ssub.s32 2048, 2048
      %540 = vsyncadd [#allocation4], %s539
      %s541 = sshll.u32 [#allocation8], 4
      %s542 = int_to_ptr.vmem [resolvable:$true] %s541
      %547 = dma.vmem_to_hbm [thread:$0]  %s542, 2048, %s3, [#allocation4], 128, 128, 8
    $region29: #{tpu_custom_call.1} parent=1 // pred_fallthru
      _
    // Predicated region
    $region30: #{tpu_custom_call.1} parent=1 // pred_check
      _
    $region31: #{tpu_custom_call.1} parent=1 // pred_check_branch
      %549 = sbr.rel (0) target = $region33
    $region32: #{tpu_custom_call.1} parent=1 // pred_region
      %550 = dma.done [#allocation4], 2048
    $region33: #{tpu_custom_call.1} parent=1 // pred_fallthru
      _
    %551 = vsyncpa [#allocation3], 1
    %552 = vsyncpa [#allocation6], 1
    %553 = vsyncpa [#allocation4], 1

// kernel: tpu_custom_call.1
$region0: #{tpu_custom_call.1}
  #allocation0 [shape = 'u32[]', space=smem, size = 0x4, offset = 0x4, fixed_abs, tag = 'smem constant byte address 0x4 - core index']
  #allocation1 [shape = 'u32[144,128]{1,0:T(1,128)}', space=vmem, size = 0x12000, scoped, tag = 'internal scratch']
  %s0 = inlined_call_operand.hbm [shape: bf16[16,16,20], index: 0, kind: input, shape index: {}]
  %s1 = inlined_call_operand.hbm [shape: bf16[1,20,128], index: 1, kind: input, shape index: {}]
  %s2 = inlined_call_operand.hbm [shape: f32[8,128], index: 2, kind: input, shape index: {}]
  %s3 = inlined_call_operand.hbm [shape: f32[8,16,128], index: 3, kind: output, shape index: {}]
  %s4 = sld [smem:[#allocation0]]
  $region34: #{tpu_custom_call.1} parent=0
    _
  %s6 = ssub.s32 1, %s4
  %s7 = scalar_select 0, %s6, %s4
  $region1: #{tpu_custom_call.1} parent=0
    #allocation2 [shape = 'u8[65536]{0}', space=vmem, size = 0x10000, scoped, tag = 'input window, operand 0, single buffered']
    #allocation3 [shape = 's32[1]{0}', space=sflag, size = 0x4, scoped, tag = 'scoped memory for tpu_custom_call.1']
    #allocation4 [shape = 's32[1]{0}', space=sflag, size = 0x4, scoped, tag = 'scoped memory for tpu_custom_call.1']
    #allocation5 [shape = 'u8[6144]{0}', space=vmem, size = 0x1800, scoped, tag = 'input window, operand 1, single buffered']
    #allocation6 [shape = 's32[1]{0}', space=sflag, size = 0x4, scoped, tag = 'scoped memory for tpu_custom_call.1']
    #allocation7 [shape = 'u8[4096]{0}', space=vmem, size = 0x1000, scoped, tag = 'input window, operand 2, single buffered']
    #allocation8 [shape = 'u8[65536]{0}', space=vmem, size = 0x10000, scoped, tag = 'output window, operand 0, single buffered']
    %8 = vsyncpa [#allocation3], 0
    %9 = vsyncpa [#allocation6], 0
    %10 = vsyncpa [#allocation4], 0
    // Predicated region
    $region2: #{tpu_custom_call.1} parent=1 // pred_check
      _
    $region3: #{tpu_custom_call.1} parent=1 // pred_check_branch
      %12 = sbr.rel (0) target = $region5
    $region4: #{tpu_custom_call.1} parent=1 // pred_region
      %s14 = ssub.s32 2048, 2048
      %15 = vsyncadd [#allocation3], %s14
      %s16 = sshll.u32 [#allocation2], 4
      %s17 = int_to_ptr.vmem [resolvable:$true] %s16
      %22 = dma.hbm_to_vmem [thread:$0]  %s0, 2048, %s17, [#allocation3], 64, 64, 4
    $region5: #{tpu_custom_call.1} parent=1 // pred_fallthru
      _
    // Predicated region
    $region6: #{tpu_custom_call.1} parent=1 // pred_check
      _
    $region7: #{tpu_custom_call.1} parent=1 // pred_check_branch
      %24 = sbr.rel (0) target = $region9
    $region8: #{tpu_custom_call.1} parent=1 // pred_region
      %s26 = ssub.s32 192, 192
      %27 = vsyncadd [#allocation6], %s26
      %s28 = sshll.u32 [#allocation5], 4
      %s29 = int_to_ptr.vmem [resolvable:$true] %s28
      %34 = dma.hbm_to_vmem [thread:$0]  %s1, 192, %s29, [#allocation6], 64, 64, 4
    $region9: #{tpu_custom_call.1} parent=1 // pred_fallthru
      _
    // Predicated region
    $region10: #{tpu_custom_call.1} parent=1 // pred_check
      _
    $region11: #{tpu_custom_call.1} parent=1 // pred_check_branch
      %36 = sbr.rel (0) target = $region13
    $region12: #{tpu_custom_call.1} parent=1 // pred_region
      %s38 = ssub.s32 128, 128
      %39 = vsyncadd [#allocation6], %s38
      %s41 = sshll.u32 [#allocation7], 4
      %s42 = int_to_ptr.vmem [resolvable:$true] %s41
      %44 = dma.hbm_to_vmem [thread:$0]  %s2, 128, %s42, [#allocation6]
    $region13: #{tpu_custom_call.1} parent=1 // pred_fallthru
      _
    // Predicated region
    $region14: #{tpu_custom_call.1} parent=1 // pred_check
      _
    $region15: #{tpu_custom_call.1} parent=1 // pred_check_branch
      %46 = sbr.rel (0) target = $region17
    $region16: #{tpu_custom_call.1} parent=1 // pred_region
      %47 = dma.done [#allocation3], 2048
    $region17: #{tpu_custom_call.1} parent=1 // pred_fallthru
      _
    // Predicated region
    $region18: #{tpu_custom_call.1} parent=1 // pred_check
      _
    $region19: #{tpu_custom_call.1} parent=1 // pred_check_branch
      %49 = sbr.rel (0) target = $region21
    $region20: #{tpu_custom_call.1} parent=1 // pred_region
      %50 = dma.done [#allocation6], 192
    $region21: #{tpu_custom_call.1} parent=1 // pred_fallthru
      _
    // Predicated region
    $region22: #{tpu_custom_call.1} parent=1 // pred_check
      _
    $region23: #{tpu_custom_call.1} parent=1 // pred_check_branch
      %52 = sbr.rel (0) target = $region25
    $region24: #{tpu_custom_call.1} parent=1 // pred_region
      %53 = dma.done [#allocation6], 128
    $region25: #{tpu_custom_call.1} parent=1 // pred_fallthru
      _
    %v55 = vld [vmem:[#allocation2] sm:$0xf]
    %v56 = vld [vmem:[#allocation2 + $0x4] sm:$0xf]
    %v57 = vld [vmem:[#allocation2 + $0x8] sm:$0xf]
    %v58 = vld [vmem:[#allocation2 + $0xc] sm:$0xf]
    %v59 = vld [vmem:[#allocation2 + $0x10] sm:$0xf]
    %v60 = vld [vmem:[#allocation2 + $0x14] sm:$0xf]
    %v61 = vld [vmem:[#allocation2 + $0x18] sm:$0xf]
    %v62 = vld [vmem:[#allocation2 + $0x1c] sm:$0xf]
    %v63 = vld [vmem:[#allocation2 + $0x20] sm:$0xf]
    %v64 = vld [vmem:[#allocation2 + $0x24] sm:$0xf]
    %v65 = vld [vmem:[#allocation2 + $0x28] sm:$0xf]
    %v66 = vld [vmem:[#allocation2 + $0x2c] sm:$0xf]
    %v67 = vld [vmem:[#allocation2 + $0x30] sm:$0xf]
    %v68 = vld [vmem:[#allocation2 + $0x34] sm:$0xf]
    %v69 = vld [vmem:[#allocation2 + $0x38] sm:$0xf]
    %v70 = vld [vmem:[#allocation2 + $0x3c] sm:$0xf]
    %v71 = vld [vmem:[#allocation2 + $0x40] sm:$0xf]
    %v72 = vld [vmem:[#allocation2 + $0x44] sm:$0xf]
    %v73 = vld [vmem:[#allocation2 + $0x48] sm:$0xf]
    %v74 = vld [vmem:[#allocation2 + $0x4c] sm:$0xf]
    %v75 = vld [vmem:[#allocation2 + $0x50] sm:$0xf]
    %v76 = vld [vmem:[#allocation2 + $0x54] sm:$0xf]
    %v77 = vld [vmem:[#allocation2 + $0x58] sm:$0xf]
    %v78 = vld [vmem:[#allocation2 + $0x5c] sm:$0xf]
    %v79 = vld [vmem:[#allocation2 + $0x60] sm:$0xf]
    %v80 = vld [vmem:[#allocation2 + $0x64] sm:$0xf]
    %v81 = vld [vmem:[#allocation2 + $0x68] sm:$0xf]
    %v82 = vld [vmem:[#allocation2 + $0x6c] sm:$0xf]
    %v83 = vld [vmem:[#allocation2 + $0x70] sm:$0xf]
    %v84 = vld [vmem:[#allocation2 + $0x74] sm:$0xf]
    %v85 = vld [vmem:[#allocation2 + $0x78] sm:$0xf]
    %v86 = vld [vmem:[#allocation2 + $0x7c] sm:$0xf]
    %v87 = vld [vmem:[#allocation5] sm:$0xf]
    %v88 = vld [vmem:[#allocation5 + $0x4] sm:$0xf]
    %v89 = vld [vmem:[#allocation5 + $0x8] sm:$0x3]
    %v90 = vld [vmem:[#allocation7] sm:$0x1]
    %v91 = vlaneseq
    %v92 = vshrl.u32 %v91, 7
    %v93 = vsub.s32 0, %v92
    %v94 = vrot.slane %v90, %v93
    %v127 = vunpack.c.l.b16 %v55
    %v128 = vunpack.c.l.b16 %v56
    %v129 = vunpack.c.l.b16 %v57
    %v130 = vunpack.c.l.b16 %v58
    %v131 = vunpack.c.l.b16 %v59
    %v132 = vunpack.c.l.b16 %v60
    %v133 = vunpack.c.l.b16 %v61
    %v134 = vunpack.c.l.b16 %v62
    %v135 = vunpack.c.l.b16 %v63
    %v136 = vunpack.c.l.b16 %v64
    %v137 = vunpack.c.l.b16 %v65
    %v138 = vunpack.c.l.b16 %v66
    %v139 = vunpack.c.l.b16 %v67
    %v140 = vunpack.c.l.b16 %v68
    %v141 = vunpack.c.l.b16 %v69
    %v142 = vunpack.c.l.b16 %v70
    %v143 = vunpack.c.l.b16 %v71
    %v144 = vunpack.c.l.b16 %v72
    %v145 = vunpack.c.l.b16 %v73
    %v146 = vunpack.c.l.b16 %v74
    %v147 = vunpack.c.l.b16 %v75
    %v148 = vunpack.c.l.b16 %v76
    %v149 = vunpack.c.l.b16 %v77
    %v150 = vunpack.c.l.b16 %v78
    %v151 = vunpack.c.l.b16 %v79
    %v152 = vunpack.c.l.b16 %v80
    %v153 = vunpack.c.l.b16 %v81
    %v154 = vunpack.c.l.b16 %v82
    %v155 = vunpack.c.l.b16 %v83
    %v156 = vunpack.c.l.b16 %v84
    %v157 = vunpack.c.l.b16 %v85
    %v158 = vunpack.c.l.b16 %v86
    %v159 = vpack.c.b16 %v128, %v127
    %v160 = vpack.c.b16 %v130, %v129
    %v161 = vpack.c.b16 %v132, %v131
    %v162 = vpack.c.b16 %v134, %v133
    %v163 = vpack.c.b16 %v136, %v135
    %v164 = vpack.c.b16 %v138, %v137
    %v165 = vpack.c.b16 %v140, %v139
    %v166 = vpack.c.b16 %v142, %v141
    %v167 = vpack.c.b16 %v144, %v143
    %v168 = vpack.c.b16 %v146, %v145
    %v169 = vpack.c.b16 %v148, %v147
    %v170 = vpack.c.b16 %v150, %v149
    %v171 = vpack.c.b16 %v152, %v151
    %v172 = vpack.c.b16 %v154, %v153
    %v173 = vpack.c.b16 %v156, %v155
    %v174 = vpack.c.b16 %v158, %v157
    %v178 = vunpack.c.l.b16 %v87
    %v179 = vunpack.c.l.b16 %v88
    %v180 = vunpack.c.l.b16 %v89
    %v181 = vpack.c.b16 %v179, %v178
    %v182 = vpack.c.b16 %v180, %v180
    %vm184 = vcmask 162816
    %v186 = vsel %vm184, %v159, 0
    %v189 = vsel %vm184, %v160, 0
    %v192 = vsel %vm184, %v161, 0
    %v195 = vsel %vm184, %v162, 0
    %v198 = vsel %vm184, %v163, 0
    %v201 = vsel %vm184, %v164, 0
    %v204 = vsel %vm184, %v165, 0
    %v207 = vsel %vm184, %v166, 0
    %v210 = vsel %vm184, %v167, 0
    %v213 = vsel %vm184, %v168, 0
    %v216 = vsel %vm184, %v169, 0
    %v219 = vsel %vm184, %v170, 0
    %v222 = vsel %vm184, %v171, 0
    %v225 = vsel %vm184, %v172, 0
    %v228 = vsel %vm184, %v173, 0
    %v231 = vsel %vm184, %v174, 0
    %vm233 = vcmask 1041408
    %v235 = vsel %vm233, %v182, 0
    %237 = vmatprep.subr.bf16.mxu0 0
    %238 = vmatpush1.bf16.msra.mxu0 %v181
    %239 = vmatprep.subr.bf16.mxu0 0
    %240 = vmatpush1.bf16.msra.mxu0 %v235
    %241 = vmatprep.subr.bf16.mxu0 0
    %242 = vmatpush1.bf16.msra.mxu0 0
    %243 = vmatprep.subr.bf16.mxu0 0
    %244 = vmatpush1.bf16.msra.mxu0 0
    %245 = vmatprep.subr.bf16.mxu0 0
    %246 = vmatpush1.bf16.msra.mxu0 0
    %247 = vmatprep.subr.bf16.mxu0 0
    %248 = vmatpush1.bf16.msra.mxu0 0
    %249 = vmatprep.subr.bf16.mxu0 0
    %250 = vmatpush1.bf16.msra.mxu0 0
    %251 = vmatprep.subr.bf16.mxu0 0
    %252 = vmatpush1.bf16.msra.mxu0 0
    %253 = vmatprep.subr.bf16.mxu0 0
    %254 = vmatpush1.bf16.msra.mxu0 0
    %255 = vmatprep.subr.bf16.mxu0 0
    %256 = vmatpush1.bf16.msra.mxu0 0
    %257 = vmatprep.subr.bf16.mxu0 0
    %258 = vmatpush1.bf16.msra.mxu0 0
    %259 = vmatprep.subr.bf16.mxu0 0
    %260 = vmatpush1.bf16.msra.mxu0 0
    %261 = vmatprep.subr.bf16.mxu0 0
    %262 = vmatpush1.bf16.msra.mxu0 0
    %263 = vmatprep.subr.bf16.mxu0 0
    %264 = vmatpush1.bf16.msra.mxu0 0
    %265 = vmatprep.subr.bf16.mxu0 0
    %266 = vmatpush1.bf16.msra.mxu0 0
    %267 = vmatprep.subr.bf16.mxu0 0
    %268 = vmatpush1.bf16.msra.mxu0 0
    %269 = vmatprep.mubr.bf16.mxu0 0
    %270 = vmatmul.mubr.bf16.gmra.mrb[0].mxu0 %v186
    %v271 = vpop.f32.mrb[0].mxu0
    %v272 = vadd.f32 %v94, %v271
    %v273 = vpop.f32.mrb[0].mxu0
    %v274 = vpop.f32.mrb[0].mxu0
    %v275 = vadd.f32 %v94, %v274
    %v276 = vpop.f32.mrb[0].mxu0
    %277 = vmatprep.mubr.bf16.mxu0 0
    %278 = vmatmul.mubr.bf16.gmra.mrb[0].mxu0 %v189
    %v279 = vpop.f32.mrb[0].mxu0
    %v280 = vadd.f32 %v94, %v279
    %v281 = vpop.f32.mrb[0].mxu0
    %v282 = vpop.f32.mrb[0].mxu0
    %v283 = vadd.f32 %v94, %v282
    %v284 = vpop.f32.mrb[0].mxu0
    %285 = vmatprep.mubr.bf16.mxu0 0
    %286 = vmatmul.mubr.bf16.gmra.mrb[0].mxu0 %v192
    %v287 = vpop.f32.mrb[0].mxu0
    %v288 = vadd.f32 %v94, %v287
    %v289 = vpop.f32.mrb[0].mxu0
    %v290 = vpop.f32.mrb[0].mxu0
    %v291 = vadd.f32 %v94, %v290
    %v292 = vpop.f32.mrb[0].mxu0
    %293 = vmatprep.mubr.bf16.mxu0 0
    %294 = vmatmul.mubr.bf16.gmra.mrb[0].mxu0 %v195
    %v295 = vpop.f32.mrb[0].mxu0
    %v296 = vadd.f32 %v94, %v295
    %v297 = vpop.f32.mrb[0].mxu0
    %v298 = vpop.f32.mrb[0].mxu0
    %v299 = vadd.f32 %v94, %v298
    %v300 = vpop.f32.mrb[0].mxu0
    %301 = vmatprep.mubr.bf16.mxu0 0
    %302 = vmatmul.mubr.bf16.gmra.mrb[0].mxu0 %v198
    %v303 = vpop.f32.mrb[0].mxu0
    %v304 = vadd.f32 %v94, %v303
    %v305 = vpop.f32.mrb[0].mxu0
    %v306 = vpop.f32.mrb[0].mxu0
    %v307 = vadd.f32 %v94, %v306
    %v308 = vpop.f32.mrb[0].mxu0
    %309 = vmatprep.mubr.bf16.mxu0 0
    %310 = vmatmul.mubr.bf16.gmra.mrb[0].mxu0 %v201
    %v311 = vpop.f32.mrb[0].mxu0
    %v312 = vadd.f32 %v94, %v311
    %v313 = vpop.f32.mrb[0].mxu0
    %v314 = vpop.f32.mrb[0].mxu0
    %v315 = vadd.f32 %v94, %v314
    %v316 = vpop.f32.mrb[0].mxu0
    %317 = vmatprep.mubr.bf16.mxu0 0
    %318 = vmatmul.mubr.bf16.gmra.mrb[0].mxu0 %v204
    %v319 = vpop.f32.mrb[0].mxu0
    %v320 = vadd.f32 %v94, %v319
    %v321 = vpop.f32.mrb[0].mxu0
    %v322 = vpop.f32.mrb[0].mxu0
    %v323 = vadd.f32 %v94, %v322
    %v324 = vpop.f32.mrb[0].mxu0
    %325 = vmatprep.mubr.bf16.mxu0 0
    %326 = vmatmul.mubr.bf16.gmra.mrb[0].mxu0 %v207
    %v327 = vpop.f32.mrb[0].mxu0
    %v328 = vadd.f32 %v94, %v327
    %v329 = vpop.f32.mrb[0].mxu0
    %v330 = vpop.f32.mrb[0].mxu0
    %v331 = vadd.f32 %v94, %v330
    %v332 = vpop.f32.mrb[0].mxu0
    %333 = vmatprep.mubr.bf16.mxu0 0
    %334 = vmatmul.mubr.bf16.gmra.mrb[0].mxu0 %v210
    %v335 = vpop.f32.mrb[0].mxu0
    %v336 = vadd.f32 %v94, %v335
    %v337 = vpop.f32.mrb[0].mxu0
    %v338 = vpop.f32.mrb[0].mxu0
    %v339 = vadd.f32 %v94, %v338
    %v340 = vpop.f32.mrb[0].mxu0
    %341 = vmatprep.mubr.bf16.mxu0 0
    %342 = vmatmul.mubr.bf16.gmra.mrb[0].mxu0 %v213
    %v343 = vpop.f32.mrb[0].mxu0
    %v344 = vadd.f32 %v94, %v343
    %v345 = vpop.f32.mrb[0].mxu0
    %v346 = vpop.f32.mrb[0].mxu0
    %v347 = vadd.f32 %v94, %v346
    %v348 = vpop.f32.mrb[0].mxu0
    %349 = vmatprep.mubr.bf16.mxu0 0
    %350 = vmatmul.mubr.bf16.gmra.mrb[0].mxu0 %v216
    %v351 = vpop.f32.mrb[0].mxu0
    %v352 = vadd.f32 %v94, %v351
    %v353 = vpop.f32.mrb[0].mxu0
    %v354 = vpop.f32.mrb[0].mxu0
    %v355 = vadd.f32 %v94, %v354
    %v356 = vpop.f32.mrb[0].mxu0
    %357 = vmatprep.mubr.bf16.mxu0 0
    %358 = vmatmul.mubr.bf16.gmra.mrb[0].mxu0 %v219
    %v359 = vpop.f32.mrb[0].mxu0
    %v360 = vadd.f32 %v94, %v359
    %v361 = vpop.f32.mrb[0].mxu0
    %v362 = vpop.f32.mrb[0].mxu0
    %v363 = vadd.f32 %v94, %v362
    %v364 = vpop.f32.mrb[0].mxu0
    %365 = vmatprep.mubr.bf16.mxu0 0
    %366 = vmatmul.mubr.bf16.gmra.mrb[0].mxu0 %v222
    %v367 = vpop.f32.mrb[0].mxu0
    %v368 = vadd.f32 %v94, %v367
    %v369 = vpop.f32.mrb[0].mxu0
    %v370 = vpop.f32.mrb[0].mxu0
    %v371 = vadd.f32 %v94, %v370
    %v372 = vpop.f32.mrb[0].mxu0
    %373 = vmatprep.mubr.bf16.mxu0 0
    %374 = vmatmul.mubr.bf16.gmra.mrb[0].mxu0 %v225
    %v375 = vpop.f32.mrb[0].mxu0
    %v376 = vadd.f32 %v94, %v375
    %v377 = vpop.f32.mrb[0].mxu0
    %v378 = vpop.f32.mrb[0].mxu0
    %v379 = vadd.f32 %v94, %v378
    %v380 = vpop.f32.mrb[0].mxu0
    %381 = vmatprep.mubr.bf16.mxu0 0
    %382 = vmatmul.mubr.bf16.gmra.mrb[0].mxu0 %v228
    %v383 = vpop.f32.mrb[0].mxu0
    %v384 = vadd.f32 %v94, %v383
    %v385 = vpop.f32.mrb[0].mxu0
    %v386 = vpop.f32.mrb[0].mxu0
    %v387 = vadd.f32 %v94, %v386
    %v388 = vpop.f32.mrb[0].mxu0
    %389 = vmatprep.mubr.bf16.mxu0 0
    %390 = vmatmul.mubr.bf16.gmra.mrb[0].mxu0 %v231
    %v391 = vpop.f32.mrb[0].mxu0
    %v392 = vadd.f32 %v94, %v391
    %v393 = vpop.f32.mrb[0].mxu0
    %v394 = vpop.f32.mrb[0].mxu0
    %v395 = vadd.f32 %v94, %v394
    %v396 = vpop.f32.mrb[0].mxu0
    %397 = vdwg.mxu0
    %v398 = vmax.f32 %v272, 0.0
    %v399 = vmax.f32 %v275, 0.0
    %v400 = vmax.f32 %v280, 0.0
    %v401 = vmax.f32 %v283, 0.0
    %v402 = vmax.f32 %v288, 0.0
    %v403 = vmax.f32 %v291, 0.0
    %v404 = vmax.f32 %v296, 0.0
    %v405 = vmax.f32 %v299, 0.0
    %v406 = vmax.f32 %v304, 0.0
    %v407 = vmax.f32 %v307, 0.0
    %v408 = vmax.f32 %v312, 0.0
    %v409 = vmax.f32 %v315, 0.0
    %v410 = vmax.f32 %v320, 0.0
    %v411 = vmax.f32 %v323, 0.0
    %v412 = vmax.f32 %v328, 0.0
    %v413 = vmax.f32 %v331, 0.0
    %v414 = vmax.f32 %v336, 0.0
    %v415 = vmax.f32 %v339, 0.0
    %v416 = vmax.f32 %v344, 0.0
    %v417 = vmax.f32 %v347, 0.0
    %v418 = vmax.f32 %v352, 0.0
    %v419 = vmax.f32 %v355, 0.0
    %v420 = vmax.f32 %v360, 0.0
    %v421 = vmax.f32 %v363, 0.0
    %v422 = vmax.f32 %v368, 0.0
    %v423 = vmax.f32 %v371, 0.0
    %v424 = vmax.f32 %v376, 0.0
    %v425 = vmax.f32 %v379, 0.0
    %v426 = vmax.f32 %v384, 0.0
    %v427 = vmax.f32 %v387, 0.0
    %v428 = vmax.f32 %v392, 0.0
    %v429 = vmax.f32 %v395, 0.0
    %v430 = vld [vmem:[#allocation7 + $0x1] sm:$0x1]
    %v431 = vlaneseq
    %v432 = vshrl.u32 %v431, 7
    %v433 = vsub.s32 0, %v432
    %v434 = vrot.slane %v430, %v433
    %v435 = vmul.f32 %v398, %v434
    %v436 = vmul.f32 %v399, %v434
    %v437 = vmul.f32 %v400, %v434
    %v438 = vmul.f32 %v401, %v434
    %v439 = vmul.f32 %v402, %v434
    %v440 = vmul.f32 %v403, %v434
    %v441 = vmul.f32 %v404, %v434
    %v442 = vmul.f32 %v405, %v434
    %v443 = vmul.f32 %v406, %v434
    %v444 = vmul.f32 %v407, %v434
    %v445 = vmul.f32 %v408, %v434
    %v446 = vmul.f32 %v409, %v434
    %v447 = vmul.f32 %v410, %v434
    %v448 = vmul.f32 %v411, %v434
    %v449 = vmul.f32 %v412, %v434
    %v450 = vmul.f32 %v413, %v434
    %v451 = vmul.f32 %v414, %v434
    %v452 = vmul.f32 %v415, %v434
    %v453 = vmul.f32 %v416, %v434
    %v454 = vmul.f32 %v417, %v434
    %v455 = vmul.f32 %v418, %v434
    %v456 = vmul.f32 %v419, %v434
    %v457 = vmul.f32 %v420, %v434
    %v458 = vmul.f32 %v421, %v434
    %v459 = vmul.f32 %v422, %v434
    %v460 = vmul.f32 %v423, %v434
    %v461 = vmul.f32 %v424, %v434
    %v462 = vmul.f32 %v425, %v434
    %v463 = vmul.f32 %v426, %v434
    %v464 = vmul.f32 %v427, %v434
    %v465 = vmul.f32 %v428, %v434
    %v466 = vmul.f32 %v429, %v434
    %v467 = vld [vmem:[#allocation7 + $0x2] sm:$0x1]
    %v468 = vlaneseq
    %v469 = vshrl.u32 %v468, 7
    %v470 = vsub.s32 0, %v469
    %v471 = vrot.slane %v467, %v470
    %v472 = vadd.f32 %v435, %v471
    %v473 = vadd.f32 %v436, %v471
    %v474 = vadd.f32 %v437, %v471
    %v475 = vadd.f32 %v438, %v471
    %v476 = vadd.f32 %v439, %v471
    %v477 = vadd.f32 %v440, %v471
    %v478 = vadd.f32 %v441, %v471
    %v479 = vadd.f32 %v442, %v471
    %v480 = vadd.f32 %v443, %v471
    %v481 = vadd.f32 %v444, %v471
    %v482 = vadd.f32 %v445, %v471
    %v483 = vadd.f32 %v446, %v471
    %v484 = vadd.f32 %v447, %v471
    %v485 = vadd.f32 %v448, %v471
    %v486 = vadd.f32 %v449, %v471
    %v487 = vadd.f32 %v450, %v471
    %v488 = vadd.f32 %v451, %v471
    %v489 = vadd.f32 %v452, %v471
    %v490 = vadd.f32 %v453, %v471
    %v491 = vadd.f32 %v454, %v471
    %v492 = vadd.f32 %v455, %v471
    %v493 = vadd.f32 %v456, %v471
    %v494 = vadd.f32 %v457, %v471
    %v495 = vadd.f32 %v458, %v471
    %v496 = vadd.f32 %v459, %v471
    %v497 = vadd.f32 %v460, %v471
    %v498 = vadd.f32 %v461, %v471
    %v499 = vadd.f32 %v462, %v471
    %v500 = vadd.f32 %v463, %v471
    %v501 = vadd.f32 %v464, %v471
    %v502 = vadd.f32 %v465, %v471
    %v503 = vadd.f32 %v466, %v471
    %v504 = vmax.f32 %v472, %v474
    %v505 = vmax.f32 %v473, %v475
    %v506 = vmax.f32 %v476, %v478
    %v507 = vmax.f32 %v477, %v479
    %v508 = vmax.f32 %v480, %v482
    %v509 = vmax.f32 %v481, %v483
    %v510 = vmax.f32 %v484, %v486
    %v511 = vmax.f32 %v485, %v487
    %v512 = vmax.f32 %v488, %v490
    %v513 = vmax.f32 %v489, %v491
    %v514 = vmax.f32 %v492, %v494
    %v515 = vmax.f32 %v493, %v495
    %v516 = vmax.f32 %v496, %v498
    %v517 = vmax.f32 %v497, %v499
    %v518 = vmax.f32 %v500, %v502
    %v519 = vmax.f32 %v501, %v503
    %520 = vst [vmem:[#allocation8] sm:$0xff] %v504
    %521 = vst [vmem:[#allocation8 + $0x8] sm:$0xff] %v505
    %522 = vst [vmem:[#allocation8 + $0x10] sm:$0xff] %v506
    %523 = vst [vmem:[#allocation8 + $0x18] sm:$0xff] %v507
    %524 = vst [vmem:[#allocation8 + $0x20] sm:$0xff] %v508
    %525 = vst [vmem:[#allocation8 + $0x28] sm:$0xff] %v509
    %526 = vst [vmem:[#allocation8 + $0x30] sm:$0xff] %v510
    %527 = vst [vmem:[#allocation8 + $0x38] sm:$0xff] %v511
    %528 = vst [vmem:[#allocation8 + $0x40] sm:$0xff] %v512
    %529 = vst [vmem:[#allocation8 + $0x48] sm:$0xff] %v513
    %530 = vst [vmem:[#allocation8 + $0x50] sm:$0xff] %v514
    %531 = vst [vmem:[#allocation8 + $0x58] sm:$0xff] %v515
    %532 = vst [vmem:[#allocation8 + $0x60] sm:$0xff] %v516
    %533 = vst [vmem:[#allocation8 + $0x68] sm:$0xff] %v517
    %534 = vst [vmem:[#allocation8 + $0x70] sm:$0xff] %v518
    %535 = vst [vmem:[#allocation8 + $0x78] sm:$0xff] %v519
    // Predicated region
    $region26: #{tpu_custom_call.1} parent=1 // pred_check
      _
    $region27: #{tpu_custom_call.1} parent=1 // pred_check_branch
      %537 = sbr.rel (0) target = $region29
    $region28: #{tpu_custom_call.1} parent=1 // pred_region
      %s539 = ssub.s32 2048, 2048
      %540 = vsyncadd [#allocation4], %s539
      %s541 = sshll.u32 [#allocation8], 4
      %s542 = int_to_ptr.vmem [resolvable:$true] %s541
      %547 = dma.vmem_to_hbm [thread:$0]  %s542, 2048, %s3, [#allocation4], 128, 128, 8
    $region29: #{tpu_custom_call.1} parent=1 // pred_fallthru
      _
    // Predicated region
    $region30: #{tpu_custom_call.1} parent=1 // pred_check
      _
    $region31: #{tpu_custom_call.1} parent=1 // pred_check_branch
      %549 = sbr.rel (0) target = $region33
    $region32: #{tpu_custom_call.1} parent=1 // pred_region
      %550 = dma.done [#allocation4], 2048
    $region33: #{tpu_custom_call.1} parent=1 // pred_fallthru
      _
    %551 = vsyncpa [#allocation3], 1
    %552 = vsyncpa [#allocation6], 1
    %553 = vsyncpa [#allocation4], 1

</llo_original>
